<compile_context>
chip_gen: v5e
topology: v5e:2x2
jax: 0.10.0
libtpu: 0.0.40
codegen_flags: <defaults>
</compile_context>

<pallas_src>
import jax
import jax.numpy as jnp
from jax.experimental import pallas as pl
from jax.experimental.pallas import tpu as pltpu

_LANE = 128
_SUBLANE = 8

# Tile caps (clamped to the padded problem size). 1024^3 tiles need at most
# ~24 MiB of tile-resident VMEM (double-buffered f32 x + bf16 w + f32 out +
# f32 acc), which fits every generation once vmem_limit_bytes is raised.
_TM_CAP = 1024
_TN_CAP = 1024
_TK_CAP = 1024

_VMEM_HEADROOM = 8 * 1024 * 1024  # on top of the computed tile footprint


def _round_up(x: int, m: int) -> int:
    return (x + m - 1) // m * m


def _best_multiple(dim: int, unit: int, cap: int) -> int:
    """Largest multiple of `unit` (<= cap) minimizing padding waste on `dim`."""
    cap = max(unit, min(cap, _round_up(dim, unit)))
    best, best_waste = unit, None
    c = unit
    while c <= cap:
        waste = _round_up(dim, c) - dim
        if best_waste is None or waste <= best_waste:
            best, best_waste = c, waste
        c += unit
    return best


def _linear_relu_kernel(x_ref, w_ref, b_ref, o_ref, acc_ref):
    k = pl.program_id(2)
    last_k = pl.num_programs(2) - 1

    # bf16 x bf16 -> f32 accumulation on the MXU. The .astype is a no-op when
    # x was pre-cast; when x arrives as f32 it is cast in-VMEM (saves a full
    # HBM cast pass for single-pass activations).
    prod = jnp.dot(
        x_ref[...].astype(jnp.bfloat16),
        w_ref[...],
        preferred_element_type=jnp.float32,
    )

    @pl.when(k == 0)
    def _first():
        # Direct overwrite: no separate zero-init store pass.
        acc_ref[...] = prod

    @pl.when(k != 0)
    def _accum():
        acc_ref[...] += prod

    @pl.when(k == last_k)
    def _epilogue():
        # Bias add + ReLU happen exactly once, after the K reduction.
        out = acc_ref[...] + b_ref[...]  # b_ref is (1, TN) f32, broadcasts over rows
        o_ref[...] = jnp.maximum(out, 0.0).astype(o_ref.dtype)


class PallasLinearReLU:
    """Inner module: relu(x @ w + b), weights preprocessed once at init."""

    def __init__(self, w, b):
        k, n = w.shape
        self.k, self.n = k, n

        # Tile sizes along K and N depend only on the fixed weights; pick the
        # multiple of 128 that minimizes padding waste (largest on ties).
        self.tn = _best_multiple(n, _LANE, _TN_CAP)
        self.tk = _best_multiple(k, _LANE, _TK_CAP)
        self.n_pad = _round_up(n, self.tn)
        self.k_pad = _round_up(k, self.tk)

        # Hoisted: cast + pad weights/bias exactly once (not per forward).
        w_bf = jnp.asarray(w).astype(jnp.bfloat16)
        self.w_p = jnp.pad(w_bf, ((0, self.k_pad - k), (0, self.n_pad - n)))
        b2 = jnp.asarray(b).reshape(1, -1).astype(jnp.float32)
        assert b2.shape[1] == n
        self.b_p = jnp.pad(b2, ((0, 0), (0, self.n_pad - n)))

        self._fwd = jax.jit(self._forward)

    def __call__(self, x):
        return self._fwd(x, self.w_p, self.b_p)

    def _forward(self, x, w_p, b_p):
        m, kx = x.shape
        assert kx == self.k, (kx, self.k)
        out_dtype = x.dtype
        tn, tk = self.tn, self.tk
        n_pad, k_pad = self.n_pad, self.k_pad

        # ---- TM selection + megacore split ------------------------------
        tm = min(_TM_CAP, _round_up(m, _SUBLANE))
        m_pad = _round_up(m, tm)
        # Ensure >= 2 parallel blocks so v7x's second TensorCore gets work.
        if (m_pad // tm) * (n_pad // tn) < 2 and m_pad >= 16 and m_pad % 16 == 0:
            tm = m_pad // 2  # still a multiple of 8, still divides m_pad

        # ---- activation cast strategy -----------------------------------
        # x is streamed (n_pad // tn) times. If it is streamed at most twice,
        # feeding the original dtype and casting in-kernel beats a separate
        # full-HBM cast pass (read f32 + write bf16 + re-read bf16).
        x_rereads = n_pad // tn
        cast_in_kernel = (x_rereads <= 2) or (x.dtype == jnp.bfloat16)
        x_in = x if cast_in_kernel else x.astype(jnp.bfloat16)
        x_itemsize = x_in.dtype.itemsize

        # Aligned fast path: pad only if actually needed.
        if (m_pad, k_pad) != (m, kx):
            x_in = jnp.pad(x_in, ((0, m_pad - m), (0, k_pad - kx)))

        grid = (m_pad // tm, n_pad // tn, k_pad // tk)

        # ---- VMEM budget / compiler params ------------------------------
        tile_vmem = (
            2 * tm * tk * x_itemsize      # double-buffered x tiles
            + 2 * tk * tn * 2             # double-buffered bf16 w tiles
            + 2 * 1 * tn * 4              # bias tiles
            + 2 * tm * tn * out_dtype.itemsize  # double-buffered out tiles
            + tm * tn * 4                 # f32 accumulator scratch
        )
        vmem_limit = int(min(max(tile_vmem + _VMEM_HEADROOM, 32 << 20), 56 << 20))

        cost = pl.CostEstimate(
            flops=2 * m_pad * n_pad * k_pad,
            transcendentals=0,
            bytes_accessed=(
                m_pad * k_pad * x_itemsize * (n_pad // tn)
                + k_pad * n_pad * 2 * (m_pad // tm)
                + m_pad * n_pad * out_dtype.itemsize
            ),
        )

        out_p = pl.pallas_call(
            _linear_relu_kernel,
            out_shape=jax.ShapeDtypeStruct((m_pad, n_pad), out_dtype),
            grid_spec=pltpu.PrefetchScalarGridSpec(
                num_scalar_prefetch=0,
                grid=grid,
                in_specs=[
                    pl.BlockSpec((tm, tk), lambda i, j, kk: (i, kk)),  # x tile
                    pl.BlockSpec((tk, tn), lambda i, j, kk: (kk, j)),  # w tile
                    pl.BlockSpec((1, tn), lambda i, j, kk: (0, j)),    # bias tile
                ],
                out_specs=pl.BlockSpec((tm, tn), lambda i, j, kk: (i, j)),
                scratch_shapes=[pltpu.VMEM((tm, tn), jnp.float32)],
            ),
            compiler_params=pltpu.CompilerParams(
                dimension_semantics=("parallel", "parallel", "arbitrary"),
                vmem_limit_bytes=vmem_limit,
            ),
            cost_estimate=cost,
        )(x_in, w_p, b_p)

        if (m_pad, n_pad) != (m, self.n):
            out_p = out_p[:m, : self.n]
        return out_p


class WrappedModel:
    """Faithful port of the PyTorch wrapper: pure delegation to `inner`."""

    def __init__(self, inner_model):
        self.inner = inner_model

    def __call__(self, *args, **kwargs):
        return self.inner(*args, **kwargs)


def _reference(x, w, b):
    # Match the kernel's numerics: bf16-rounded operands, f32 accumulation.
    xr = x.astype(jnp.bfloat16).astype(jnp.float32)
    wr = w.astype(jnp.bfloat16).astype(jnp.float32)
    return jnp.maximum(
        jnp.dot(xr, wr, preferred_element_type=jnp.float32) + b.reshape(1, -1),
        0.0,
    )


if __name__ == "__main__":
    key = jax.random.PRNGKey(0)

    # --- Test 1: lane-dense shapes. With n=256 -> one N tile, the activation
    #             is streamed once (cast-in-kernel path), and M is split so
    #             the parallel grid has >= 2 blocks for v7x. -----------------
    m1, k1, n1 = 64, 1024, 256
    kx, kw, kb, key = jax.random.split(key, 4)
    x1 = jax.random.normal(kx, (m1, k1), dtype=jnp.float32)
    w1 = jax.random.normal(kw, (k1, n1), dtype=jnp.float32) * 0.1
    b1 = jax.random.normal(kb, (1, n1), dtype=jnp.float32) * 0.1

    model1 = WrappedModel(PallasLinearReLU(w1, b1))
    out1 = model1(x1)
    jax.block_until_ready(out1)
    ref1 = _reference(x1, w1, b1)
    assert out1.shape == (m1, n1)
    assert jnp.allclose(out1, ref1, atol=1e-3, rtol=1e-3), float(
        jnp.max(jnp.abs(out1 - ref1))
    )

    # --- Test 2: tiny, non-aligned shape (8 x 32) goes through the padded
    #             path and is sliced back. ----------------------------------
    m2, k2, n2 = 8, 32, 32
    kx, kw, kb, key = jax.random.split(key, 4)
    x2 = jax.random.normal(kx, (m2, k2), dtype=jnp.float32)
    w2 = jax.random.normal(kw, (k2, n2), dtype=jnp.float32) * 0.1
    b2 = jax.random.normal(kb, (1, n2), dtype=jnp.float32) * 0.1

    model2 = WrappedModel(PallasLinearReLU(w2, b2))
    out2 = model2(x2)
    jax.block_until_ready(out2)
    ref2 = _reference(x2, w2, b2)
    assert out2.shape == (m2, n2)
    assert jnp.allclose(out2, ref2, atol=1e-3, rtol=1e-3), float(
        jnp.max(jnp.abs(out2 - ref2))
    )

    # TODO(synk): the spec's WrappedModel carries no compute of its own; the
    # Linear+ReLU inner module is a chosen concrete instantiation.
    print("KERNEL_OK")
</pallas_src>

<mosaic_0001>
module attributes {stable_mosaic.version = 11 : i64} {
  func.func @_linear_relu_kernel(%arg0: i32, %arg1: i32, %arg2: i32, %arg3: memref<32x1024xf32, #tpu.memory_space<vmem>>, %arg4: memref<1024x256xbf16, #tpu.memory_space<vmem>>, %arg5: memref<1x256xf32, #tpu.memory_space<vmem>>, %arg6: memref<32x256xf32, #tpu.memory_space<vmem>>, %arg7: memref<32x256xf32, #tpu.memory_space<vmem>>) attributes {dimension_semantics = [#tpu.dimension_semantics<parallel>, #tpu.dimension_semantics<parallel>, #tpu.dimension_semantics<arbitrary>], iteration_bounds = array<i64: 2, 1, 1>, scalar_prefetch = 0 : i64, scratch_operands = 1 : i64, tpu.core_type = #tpu.core_type<tc>, window_params = [{transform_indices = @transform_0, window_bounds = array<i64: 32, 1024>}, {transform_indices = @transform_1, window_bounds = array<i64: 1024, 256>}, {transform_indices = @transform_2, window_bounds = array<i64: 1, 256>}, {transform_indices = @transform_3, window_bounds = array<i64: 32, 256>}]} {
    %c0 = arith.constant 0 : index
    %c0_0 = arith.constant 0 : index
    %0 = vector.load %arg3[%c0, %c0_0] : memref<32x1024xf32, #tpu.memory_space<vmem>>, vector<32x1024xf32>
    %1 = arith.truncf %0 : vector<32x1024xf32> to vector<32x1024xbf16>
    %c0_1 = arith.constant 0 : index
    %c0_2 = arith.constant 0 : index
    %2 = vector.load %arg4[%c0_1, %c0_2] : memref<1024x256xbf16, #tpu.memory_space<vmem>>, vector<1024x256xbf16>
    %cst = arith.constant dense<0.000000e+00> : vector<32x256xf32>
    %3 = tpu.matmul %1, %2, %cst {dimension_numbers = #tpu.dot_dimension_numbers<[1], [0], [0], [1], [0, 0, 1, 1], [], []>} : vector<32x1024xbf16>, vector<1024x256xbf16>, vector<32x256xf32> -> vector<32x256xf32>
    %c0_i32 = arith.constant 0 : i32
    %4 = arith.cmpi eq, %arg2, %c0_i32 : i32
    %5 = arith.extui %4 : i1 to i32
    %c0_i32_3 = arith.constant 0 : i32
    %6 = arith.cmpi ne, %5, %c0_i32_3 : i32
    scf.if %6 {
      %c0_8 = arith.constant 0 : index
      %c0_9 = arith.constant 0 : index
      %13 = vector.load %arg7[%c0_8, %c0_9] : memref<32x256xf32, #tpu.memory_space<vmem>>, vector<32x256xf32>
      tpu.vector_store %arg7[%c0_8, %c0_9], %3 {strides = array<i32>} : memref<32x256xf32, #tpu.memory_space<vmem>>, vector<32x256xf32>,
    } else {
    }
    %c0_i32_4 = arith.constant 0 : i32
    %7 = arith.cmpi ne, %arg2, %c0_i32_4 : i32
    %8 = arith.extui %7 : i1 to i32
    %c0_i32_5 = arith.constant 0 : i32
    %9 = arith.cmpi ne, %8, %c0_i32_5 : i32
    scf.if %9 {
      %c0_8 = arith.constant 0 : index
      %c0_9 = arith.constant 0 : index
      %13 = vector.load %arg7[%c0_8, %c0_9] : memref<32x256xf32, #tpu.memory_space<vmem>>, vector<32x256xf32>
      %14 = arith.addf %13, %3 : vector<32x256xf32>
      %c0_10 = arith.constant 0 : index
      %c0_11 = arith.constant 0 : index
      %15 = vector.load %arg7[%c0_10, %c0_11] : memref<32x256xf32, #tpu.memory_space<vmem>>, vector<32x256xf32>
      tpu.vector_store %arg7[%c0_10, %c0_11], %14 {strides = array<i32>} : memref<32x256xf32, #tpu.memory_space<vmem>>, vector<32x256xf32>,
    } else {
    }
    %c0_i32_6 = arith.constant 0 : i32
    %10 = arith.cmpi eq, %arg2, %c0_i32_6 : i32
    %11 = arith.extui %10 : i1 to i32
    %c0_i32_7 = arith.constant 0 : i32
    %12 = arith.cmpi ne, %11, %c0_i32_7 : i32
    scf.if %12 {
      %c0_8 = arith.constant 0 : index
      %c0_9 = arith.constant 0 : index
      %13 = vector.load %arg7[%c0_8, %c0_9] : memref<32x256xf32, #tpu.memory_space<vmem>>, vector<32x256xf32>
      %c0_10 = arith.constant 0 : index
      %c0_11 = arith.constant 0 : index
      %14 = vector.load %arg5[%c0_10, %c0_11] : memref<1x256xf32, #tpu.memory_space<vmem>>, vector<1x256xf32>
      %15 = vector.broadcast %14 : vector<1x256xf32> to vector<32x256xf32>
      %16 = arith.addf %13, %15 : vector<32x256xf32>
      %cst_12 = arith.constant 0.000000e+00 : f32
      %17 = vector.broadcast %cst_12 : f32 to vector<32x256xf32>
      %18 = arith.maximumf %16, %17 : vector<32x256xf32>
      %c0_13 = arith.constant 0 : index
      %c0_14 = arith.constant 0 : index
      %19 = vector.load %arg6[%c0_13, %c0_14] : memref<32x256xf32, #tpu.memory_space<vmem>>, vector<32x256xf32>
      tpu.vector_store %arg6[%c0_13, %c0_14], %18 {strides = array<i32>} : memref<32x256xf32, #tpu.memory_space<vmem>>, vector<32x256xf32>,
    } else {
    }
    return
  }
  func.func @transform_0(%arg0: i32, %arg1: i32, %arg2: i32) -> (i32, i32) {
    %c0_i32 = arith.constant 0 : i32
    return %arg0, %arg2 : i32, i32
  }
  func.func @transform_1(%arg0: i32, %arg1: i32, %arg2: i32) -> (i32, i32) {
    %c0_i32 = arith.constant 0 : i32
    return %arg2, %arg1 : i32, i32
  }
  func.func @transform_2(%arg0: i32, %arg1: i32, %arg2: i32) -> (i32, i32) {
    %c0_i32 = arith.constant 0 : i32
    %c0_i32_0 = arith.constant 0 : i32
    return %c0_i32, %arg1 : i32, i32
  }
  func.func @transform_3(%arg0: i32, %arg1: i32, %arg2: i32) -> (i32, i32) {
    %c0_i32 = arith.constant 0 : i32
    return %arg0, %arg1 : i32, i32
  }
}

</mosaic_0001>

<llo_original>
// kernel: _forward.1
$region0: #{_forward.1}
  #allocation0 [shape = 'u32[]', space=smem, size = 0x4, offset = 0x4, fixed_abs, tag = 'smem constant byte address 0x4 - core index']
  #allocation1 [shape = 'u32[72,128]{1,0:T(1,128)}', space=vmem, size = 0x9000, scoped, tag = 'internal scratch']
  #allocation2 [shape = 'f32[32,256]{1,0:T(8,128)}', space=vmem, size = 0x8000, scoped, tag = 'scratch operand']
  %s0 = inlined_call_operand.hbm [shape: f32[64,1024], index: 0, kind: input, shape index: {}]
  %s1 = inlined_call_operand.hbm [shape: bf16[1024,256], index: 1, kind: input, shape index: {}]
  %s2 = inlined_call_operand.hbm [shape: f32[1,256], index: 2, kind: input, shape index: {}]
  %s3 = inlined_call_operand.hbm [shape: f32[64,256], index: 3, kind: output, shape index: {}]
  %s4 = sld [smem:[#allocation0]]
  $region69: #{_forward.1} parent=0
    _
  %s6 = ssub.s32 1, %s4
  %s7 = scalar_select 0, %s6, %s4
  $region1: #{_forward.1} parent=0
    #allocation3 [shape = 'u8[262144]{0}', space=vmem, size = 0x40000, scoped, tag = 'input window, operand 0']
    #allocation4 [shape = 's32[2]{0}', space=sflag, size = 0x8, scoped, tag = 'scoped memory for _forward.1']
    #allocation5 [shape = 's32[2]{0}', space=sflag, size = 0x8, scoped, tag = 'scoped memory for _forward.1']
    #allocation6 [shape = 'u8[524288]{0}', space=vmem, size = 0x80000, scoped, tag = 'input window, operand 1, single buffered']
    #allocation7 [shape = 's32[1]{0}', space=sflag, size = 0x4, scoped, tag = 'scoped memory for _forward.1']
    #allocation8 [shape = 'u8[1024]{0}', space=vmem, size = 0x400, scoped, tag = 'input window, operand 2, single buffered']
    #allocation9 [shape = 'u8[65536]{0}', space=vmem, size = 0x10000, scoped, tag = 'output window, operand 0']
    %8 = vsyncpa [#allocation4], 0
    %s9 = scalar_lea.sflag [#allocation4], 1
    %10 = vsyncpa %s9, 0
    %11 = vsyncpa [#allocation7], 0
    %12 = vsyncpa [#allocation5], 0
    %s13 = scalar_lea.sflag [#allocation5], 1
    %14 = vsyncpa %s13, 0
    loop: start=0, step=1, limit=4
    $region2: #{_forward.1} parent=1 // loop_pre_header
      _
    $region3: #{_forward.1} parent=1 // loop_header
      %s16 = sphi 0, %s20
      %p17 = scmp.ge.s32.totalorder %s16, 4
      %s23 = sphi 0, %s42
      %s24 = sphi 0, %s38
      %s25 = sphi 0, %s34
      %s26 = sphi 0, %s23
      %s27 = sphi 0, %s24
      %s28 = sphi 0, %s25
      %s29 = sphi 0, %s26
      %s30 = sphi 0, %s27
      %s31 = sphi 0, %s28
      %s47 = sphi 0, %s49
      %s50 = sphi 0, %s47
      %s51 = sphi 0, %s50
      %s67 = sphi 0, %s51
      %s75 = sphi 0, %s77
      %s78 = sphi 0, %s75
      %s79 = sphi 0, %s78
      %s95 = sphi 0, %s79
      %s101 = sphi 0, %s103
      %s104 = sphi 0, %s101
      %s105 = sphi 0, %s104
      %s121 = sphi 0, %s105
      %s129 = sphi 0, %s131
      %s132 = sphi 0, %s129
      %s133 = sphi 0, %s132
      %s149 = sphi 0, %s133
    $region4: #{_forward.1} parent=1 // loop_header_branch
      %19 = sbr.rel (%p17) target = $region8
    $region5: #{_forward.1} parent=1 // loop_body
      %s21 = ssub.s32 %s16, 1
      %s22 = ssub.s32 %s16, 2
      %s32 = sadd.s32 1, %s25
      %p33 = scmp.ge.s32.totalorder %s32, 1
      %s34 = scalar_select %p33, 0, %s32
      %s35 = sadd.s32 1, %s24
      %s36 = scalar_select %p33, %s35, %s24
      %p37 = scmp.ge.s32.totalorder %s36, 1
      %s38 = scalar_select %p37, 0, %s36
      %s39 = sadd.s32 1, %s23
      %s40 = scalar_select %p37, %s39, %s23
      %p41 = scmp.ge.s32.totalorder %s40, 2
      %s42 = scalar_select %p41, 0, %s40
      %s43 = ssub.s32 %s23, %s42
      %s44 = ssub.s32 %s25, %s34
      %s45 = sor.u32 %s43, %s44
      %p46 = scmp.eq.s32.totalorder %s45, 0
      %s48 = sadd.s32 %s47, 1
      %s49 = scalar_select %p46, %s47, %s48
      %p52 = pneg %p46
      %p53 = scmp.eq.s32.totalorder %s16, 1
      %p54 = por %p52, %p53
      %p55 = scmp.ne.s32.totalorder %s47, %s50
      %p56 = scmp.eq.s32.totalorder %s16, 0
      %p57 = por %p55, %p56
      %p58 = scmp.ne.s32.totalorder %s47, %s50
      %p59 = scmp.eq.s32.totalorder %s21, 1
      %p60 = por %p58, %p59
      %p61 = scmp.ne.s32.totalorder %s50, %s51
      %p62 = scmp.eq.s32.totalorder %s21, 0
      %p63 = por %p61, %p62
      %p64 = scmp.ne.s32.totalorder %s50, %s51
      %p65 = scmp.eq.s32.totalorder %s22, 1
      %p66 = por %p64, %p65
      %p68 = scmp.ne.s32.totalorder %s51, %s67
      %p69 = scmp.eq.s32.totalorder %s22, 0
      %p70 = por %p68, %p69
      %s71 = ssub.s32 %s25, %s34
      %s72 = ssub.s32 %s24, %s38
      %s73 = sor.u32 %s71, %s72
      %p74 = scmp.eq.s32.totalorder %s73, 0
      %s76 = sadd.s32 %s75, 1
      %s77 = scalar_select %p74, %s75, %s76
      %p80 = pneg %p74
      %p81 = scmp.eq.s32.totalorder %s16, 1
      %p82 = por %p80, %p81
      %p83 = scmp.ne.s32.totalorder %s75, %s78
      %p84 = scmp.eq.s32.totalorder %s16, 0
      %p85 = por %p83, %p84
      %p86 = scmp.ne.s32.totalorder %s75, %s78
      %p87 = scmp.eq.s32.totalorder %s21, 1
      %p88 = por %p86, %p87
      %p89 = scmp.ne.s32.totalorder %s78, %s79
      %p90 = scmp.eq.s32.totalorder %s21, 0
      %p91 = por %p89, %p90
      %p92 = scmp.ne.s32.totalorder %s78, %s79
      %p93 = scmp.eq.s32.totalorder %s22, 1
      %p94 = por %p92, %p93
      %p96 = scmp.ne.s32.totalorder %s79, %s95
      %p97 = scmp.eq.s32.totalorder %s22, 0
      %p98 = por %p96, %p97
      %s99 = ssub.s32 %s24, %s38
      %p100 = scmp.eq.s32.totalorder %s99, 0
      %s102 = sadd.s32 %s101, 1
      %s103 = scalar_select %p100, %s101, %s102
      %p106 = pneg %p100
      %p107 = scmp.eq.s32.totalorder %s16, 1
      %p108 = por %p106, %p107
      %p109 = scmp.ne.s32.totalorder %s101, %s104
      %p110 = scmp.eq.s32.totalorder %s16, 0
      %p111 = por %p109, %p110
      %p112 = scmp.ne.s32.totalorder %s101, %s104
      %p113 = scmp.eq.s32.totalorder %s21, 1
      %p114 = por %p112, %p113
      %p115 = scmp.ne.s32.totalorder %s104, %s105
      %p116 = scmp.eq.s32.totalorder %s21, 0
      %p117 = por %p115, %p116
      %p118 = scmp.ne.s32.totalorder %s104, %s105
      %p119 = scmp.eq.s32.totalorder %s22, 1
      %p120 = por %p118, %p119
      %p122 = scmp.ne.s32.totalorder %s105, %s121
      %p123 = scmp.eq.s32.totalorder %s22, 0
      %p124 = por %p122, %p123
      %s125 = ssub.s32 %s23, %s42
      %s126 = ssub.s32 %s24, %s38
      %s127 = sor.u32 %s125, %s126
      %p128 = scmp.eq.s32.totalorder %s127, 0
      %s130 = sadd.s32 %s129, 1
      %s131 = scalar_select %p128, %s129, %s130
      %p134 = pneg %p128
      %p135 = scmp.eq.s32.totalorder %s16, 1
      %p136 = por %p134, %p135
      %p137 = scmp.ne.s32.totalorder %s129, %s132
      %p138 = scmp.eq.s32.totalorder %s16, 0
      %p139 = por %p137, %p138
      %p140 = scmp.ne.s32.totalorder %s129, %s132
      %p141 = scmp.eq.s32.totalorder %s21, 1
      %p142 = por %p140, %p141
      %p143 = scmp.ne.s32.totalorder %s132, %s133
      %p144 = scmp.eq.s32.totalorder %s21, 0
      %p145 = por %p143, %p144
      %p146 = scmp.ne.s32.totalorder %s132, %s133
      %p147 = scmp.eq.s32.totalorder %s22, 1
      %p148 = por %p146, %p147
      %p150 = scmp.ne.s32.totalorder %s133, %s149
      %p151 = scmp.eq.s32.totalorder %s22, 0
      %p152 = por %p150, %p151
      %p153 = scmp.le.s32.totalorder 1, %s16
      %p154 = scmp.lt.s32.totalorder %s16, 3
      %p155 = pnand %p153, %p154
      %p156 = pneg %p155
      // Predicated region
      $region9: #{_forward.1} parent=5 // pred_check
        _
      $region10: #{_forward.1} parent=5 // pred_check_branch
        %158 = sbr.rel (%p155) target = $region12
      $region11: #{_forward.1} parent=5 // pred_region
        %s159 = ssub.s32 %s16, 1
        // Predicated region
        $region13: #{_forward.1} parent=11 // pred_check
          %p160 = pneg %p91
        $region14: #{_forward.1} parent=11 // pred_check_branch
          %162 = sbr.rel (%p160) target = $region16
        $region15: #{_forward.1} parent=11 // pred_region
          %s163 = smul.u32 128, %s28
          %s164 = smul.u32 2, %s27
          %166 = vsyncadd [#allocation7], 0
          %s167 = smul.addr %s163, 2
          %s168 = sadd.s32 %s164, %s167
          %s169 = smul.addr %s168, 4
          %s170 = scalar_lea.hbm %s1, %s169
          %s171 = sshll.u32 %s170, 4
          %s172 = int_to_ptr.hbm [resolvable:$true] %s171
          %s173 = sshll.u32 [#allocation6], 4
          %s174 = int_to_ptr.vmem [resolvable:$true] %s173
          %179 = dma.hbm_to_vmem [thread:$0]  %s172, 16384, %s174, [#allocation7], 128, 128, 8
        $region16: #{_forward.1} parent=11 // pred_fallthru
          _
        // Predicated region
        $region17: #{_forward.1} parent=11 // pred_check
          %p180 = pneg %p117
        $region18: #{_forward.1} parent=11 // pred_check_branch
          %182 = sbr.rel (%p180) target = $region20
        $region19: #{_forward.1} parent=11 // pred_region
          %s183 = smul.u32 2, %s27
          %185 = vsyncadd [#allocation7], 0
          %s186 = scalar_lea.hbm %s2, %s183
          %s188 = sshll.u32 %s186, 4
          %s189 = int_to_ptr.hbm [resolvable:$true] %s188
          %s190 = sshll.u32 [#allocation8], 4
          %s191 = int_to_ptr.vmem [resolvable:$true] %s190
          %193 = dma.hbm_to_vmem [thread:$0]  %s189, 32, %s191, [#allocation7]
        $region20: #{_forward.1} parent=11 // pred_fallthru
          _
      $region12: #{_forward.1} parent=5 // pred_fallthru
        _
      %p194 = scmp.lt.s32.totalorder %s16, 2
      // Predicated region
      $region21: #{_forward.1} parent=5 // pred_check
        %p195 = pneg %p194
      $region22: #{_forward.1} parent=5 // pred_check_branch
        %197 = sbr.rel (%p195) target = $region24
      $region23: #{_forward.1} parent=5 // pred_region
        // Predicated region
        $region25: #{_forward.1} parent=23 // pred_check
          %p198 = pneg %p57
        $region26: #{_forward.1} parent=23 // pred_check_branch
          %200 = sbr.rel (%p198) target = $region28
        $region27: #{_forward.1} parent=23 // pred_region
          %s201 = sand.u32 %s47, 1
          %s202 = scalar_lea.sflag [#allocation4], %s201
          %s203 = sand.u32 %s47, 1
          %s204 = smul.addr %s203, 256
          %s205 = scalar_lea.vmem [#allocation3], %s204
          %s206 = smul.u32 4, %s23
          %s207 = smul.u32 8, %s25
          %209 = vsyncadd %s202, 0
          %s210 = smul.addr %s206, 8
          %s211 = sadd.s32 %s207, %s210
          %s212 = smul.addr %s211, 8
          %s213 = scalar_lea.hbm %s0, %s212
          %s214 = sshll.u32 %s213, 4
          %s215 = int_to_ptr.hbm [resolvable:$true] %s214
          %s216 = sshll.u32 %s205, 4
          %s217 = int_to_ptr.vmem [resolvable:$true] %s216
          %222 = dma.hbm_to_vmem [thread:$0]  %s215, 4096, %s217, %s202, 1024, 1024, 64
        $region28: #{_forward.1} parent=23 // pred_fallthru
          _
      $region24: #{_forward.1} parent=5 // pred_fallthru
        _
      %p223 = scmp.le.s32.totalorder 1, %s16
      %p224 = scmp.lt.s32.totalorder %s16, 3
      %p225 = pnand %p223, %p224
      %p226 = pneg %p225
      // Predicated region
      $region29: #{_forward.1} parent=5 // pred_check
        _
      $region30: #{_forward.1} parent=5 // pred_check_branch
        %228 = sbr.rel (%p225) target = $region32
      $region31: #{_forward.1} parent=5 // pred_region
        %s229 = ssub.s32 %s16, 1
        %s230 = sand.u32 %s50, 1
        %s231 = scalar_lea.sflag [#allocation4], %s230
        %s232 = sand.u32 %s50, 1
        %s233 = smul.addr %s232, 256
        %s234 = scalar_lea.vmem [#allocation3], %s233
        // Predicated region
        $region33: #{_forward.1} parent=31 // pred_check
          %p235 = pneg %p63
        $region34: #{_forward.1} parent=31 // pred_check_branch
          %237 = sbr.rel (%p235) target = $region36
        $region35: #{_forward.1} parent=31 // pred_region
          %239 = dma.done %s231, 4096
        $region36: #{_forward.1} parent=31 // pred_fallthru
          _
        // Predicated region
        $region37: #{_forward.1} parent=31 // pred_check
          %p240 = pneg %p91
        $region38: #{_forward.1} parent=31 // pred_check_branch
          %242 = sbr.rel (%p240) target = $region40
        $region39: #{_forward.1} parent=31 // pred_region
          %244 = dma.done [#allocation7], 16384
        $region40: #{_forward.1} parent=31 // pred_fallthru
          _
        // Predicated region
        $region41: #{_forward.1} parent=31 // pred_check
          %p245 = pneg %p117
        $region42: #{_forward.1} parent=31 // pred_check_branch
          %247 = sbr.rel (%p245) target = $region44
        $region43: #{_forward.1} parent=31 // pred_region
          %249 = dma.done [#allocation7], 32
        $region44: #{_forward.1} parent=31 // pred_fallthru
          _
        %s250 = sand.u32 %s50, 1
        %s251 = scalar_lea.sflag [#allocation4], %s250
        %s252 = sand.u32 %s50, 1
        %s253 = smul.addr %s252, 256
        %s254 = scalar_lea.vmem [#allocation3], %s253
        %p255 = pneg %p63
        %p256 = pneg %p60
        %p257 = pneg %p91
        %p258 = pneg %p88
        %p259 = pneg %p117
        %p260 = pneg %p114
        %p261 = pneg %p145
        %p262 = pneg %p142
        %s263 = sand.u32 %s132, 1
        %s264 = scalar_lea.sflag [#allocation5], %s263
        %s265 = sand.u32 %s132, 1
        %s266 = smul.addr %s265, 64
        %s267 = scalar_lea.vmem [#allocation9], %s266
        %s268 = smul.u32 4, %s26
        %s269 = smul.u32 8, %s28
        %s270 = smul.u32 128, %s28
        %s271 = smul.u32 2, %s27
        %s272 = smul.u32 2, %s27
        %s273 = smul.u32 4, %s26
        %s274 = smul.u32 2, %s27
        %v275 = vld [vmem:[%s234] sm:$0xff]
        %v276 = vld [vmem:[%s234 + $0x8] sm:$0xff]
        %v277 = vld [vmem:[%s234 + $0x10] sm:$0xff]
        %v278 = vld [vmem:[%s234 + $0x18] sm:$0xff]
        %v279 = vld [vmem:[%s234 + $0x20] sm:$0xff]
        %v280 = vld [vmem:[%s234 + $0x28] sm:$0xff]
        %v281 = vld [vmem:[%s234 + $0x30] sm:$0xff]
        %v282 = vld [vmem:[%s234 + $0x38] sm:$0xff]
        %v283 = vld [vmem:[%s234 + $0x40] sm:$0xff]
        %v284 = vld [vmem:[%s234 + $0x48] sm:$0xff]
        %v285 = vld [vmem:[%s234 + $0x50] sm:$0xff]
        %v286 = vld [vmem:[%s234 + $0x58] sm:$0xff]
        %v287 = vld [vmem:[%s234 + $0x60] sm:$0xff]
        %v288 = vld [vmem:[%s234 + $0x68] sm:$0xff]
        %v289 = vld [vmem:[%s234 + $0x70] sm:$0xff]
        %v290 = vld [vmem:[%s234 + $0x78] sm:$0xff]
        %v291 = vld [vmem:[%s234 + $0x80] sm:$0xff]
        %v292 = vld [vmem:[%s234 + $0x88] sm:$0xff]
        %v293 = vld [vmem:[%s234 + $0x90] sm:$0xff]
        %v294 = vld [vmem:[%s234 + $0x98] sm:$0xff]
        %v295 = vld [vmem:[%s234 + $0xa0] sm:$0xff]
        %v296 = vld [vmem:[%s234 + $0xa8] sm:$0xff]
        %v297 = vld [vmem:[%s234 + $0xb0] sm:$0xff]
        %v298 = vld [vmem:[%s234 + $0xb8] sm:$0xff]
        %v299 = vld [vmem:[%s234 + $0xc0] sm:$0xff]
        %v300 = vld [vmem:[%s234 + $0xc8] sm:$0xff]
        %v301 = vld [vmem:[%s234 + $0xd0] sm:$0xff]
        %v302 = vld [vmem:[%s234 + $0xd8] sm:$0xff]
        %v303 = vld [vmem:[%s234 + $0xe0] sm:$0xff]
        %v304 = vld [vmem:[%s234 + $0xe8] sm:$0xff]
        %v305 = vld [vmem:[%s234 + $0xf0] sm:$0xff]
        %v306 = vld [vmem:[%s234 + $0xf8] sm:$0xff]
        %v307 = vpack.c.bf16 %v283, %v275
        %v308 = vpack.c.bf16 %v284, %v276
        %v309 = vpack.c.bf16 %v285, %v277
        %v310 = vpack.c.bf16 %v286, %v278
        %v311 = vpack.c.bf16 %v287, %v279
        %v312 = vpack.c.bf16 %v288, %v280
        %v313 = vpack.c.bf16 %v289, %v281
        %v314 = vpack.c.bf16 %v290, %v282
        %v315 = vpack.c.bf16 %v299, %v291
        %v316 = vpack.c.bf16 %v300, %v292
        %v317 = vpack.c.bf16 %v301, %v293
        %v318 = vpack.c.bf16 %v302, %v294
        %v319 = vpack.c.bf16 %v303, %v295
        %v320 = vpack.c.bf16 %v304, %v296
        %v321 = vpack.c.bf16 %v305, %v297
        %v322 = vpack.c.bf16 %v306, %v298
        %v323 = vld [vmem:[#allocation6] sm:$0xff]
        %v324 = vld [vmem:[#allocation6 + $0x8] sm:$0xff]
        %v325 = vld [vmem:[#allocation6 + $0x10] sm:$0xff]
        %v326 = vld [vmem:[#allocation6 + $0x18] sm:$0xff]
        %v327 = vld [vmem:[#allocation6 + $0x20] sm:$0xff]
        %v328 = vld [vmem:[#allocation6 + $0x28] sm:$0xff]
        %v329 = vld [vmem:[#allocation6 + $0x30] sm:$0xff]
        %v330 = vld [vmem:[#allocation6 + $0x38] sm:$0xff]
        %v331 = vld [vmem:[#allocation6 + $0x40] sm:$0xff]
        %v332 = vld [vmem:[#allocation6 + $0x48] sm:$0xff]
        %v333 = vld [vmem:[#allocation6 + $0x50] sm:$0xff]
        %v334 = vld [vmem:[#allocation6 + $0x58] sm:$0xff]
        %v335 = vld [vmem:[#allocation6 + $0x60] sm:$0xff]
        %v336 = vld [vmem:[#allocation6 + $0x68] sm:$0xff]
        %v337 = vld [vmem:[#allocation6 + $0x70] sm:$0xff]
        %v338 = vld [vmem:[#allocation6 + $0x78] sm:$0xff]
        %v339 = vld [vmem:[#allocation6 + $0x80] sm:$0xff]
        %v340 = vld [vmem:[#allocation6 + $0x88] sm:$0xff]
        %v341 = vld [vmem:[#allocation6 + $0x90] sm:$0xff]
        %v342 = vld [vmem:[#allocation6 + $0x98] sm:$0xff]
        %v343 = vld [vmem:[#allocation6 + $0xa0] sm:$0xff]
        %v344 = vld [vmem:[#allocation6 + $0xa8] sm:$0xff]
        %v345 = vld [vmem:[#allocation6 + $0xb0] sm:$0xff]
        %v346 = vld [vmem:[#allocation6 + $0xb8] sm:$0xff]
        %v347 = vld [vmem:[#allocation6 + $0xc0] sm:$0xff]
        %v348 = vld [vmem:[#allocation6 + $0xc8] sm:$0xff]
        %v349 = vld [vmem:[#allocation6 + $0xd0] sm:$0xff]
        %v350 = vld [vmem:[#allocation6 + $0xd8] sm:$0xff]
        %v351 = vld [vmem:[#allocation6 + $0xe0] sm:$0xff]
        %v352 = vld [vmem:[#allocation6 + $0xe8] sm:$0xff]
        %v353 = vld [vmem:[#allocation6 + $0xf0] sm:$0xff]
        %v354 = vld [vmem:[#allocation6 + $0xf8] sm:$0xff]
        %v355 = vld [vmem:[#allocation6 + $0x100] sm:$0xff]
        %v356 = vld [vmem:[#allocation6 + $0x108] sm:$0xff]
        %v357 = vld [vmem:[#allocation6 + $0x110] sm:$0xff]
        %v358 = vld [vmem:[#allocation6 + $0x118] sm:$0xff]
        %v359 = vld [vmem:[#allocation6 + $0x120] sm:$0xff]
        %v360 = vld [vmem:[#allocation6 + $0x128] sm:$0xff]
        %v361 = vld [vmem:[#allocation6 + $0x130] sm:$0xff]
        %v362 = vld [vmem:[#allocation6 + $0x138] sm:$0xff]
        %v363 = vld [vmem:[#allocation6 + $0x140] sm:$0xff]
        %v364 = vld [vmem:[#allocation6 + $0x148] sm:$0xff]
        %v365 = vld [vmem:[#allocation6 + $0x150] sm:$0xff]
        %v366 = vld [vmem:[#allocation6 + $0x158] sm:$0xff]
        %v367 = vld [vmem:[#allocation6 + $0x160] sm:$0xff]
        %v368 = vld [vmem:[#allocation6 + $0x168] sm:$0xff]
        %v369 = vld [vmem:[#allocation6 + $0x170] sm:$0xff]
        %v370 = vld [vmem:[#allocation6 + $0x178] sm:$0xff]
        %v371 = vld [vmem:[#allocation6 + $0x180] sm:$0xff]
        %v372 = vld [vmem:[#allocation6 + $0x188] sm:$0xff]
        %v373 = vld [vmem:[#allocation6 + $0x190] sm:$0xff]
        %v374 = vld [vmem:[#allocation6 + $0x198] sm:$0xff]
        %v375 = vld [vmem:[#allocation6 + $0x1a0] sm:$0xff]
        %v376 = vld [vmem:[#allocation6 + $0x1a8] sm:$0xff]
        %v377 = vld [vmem:[#allocation6 + $0x1b0] sm:$0xff]
        %v378 = vld [vmem:[#allocation6 + $0x1b8] sm:$0xff]
        %v379 = vld [vmem:[#allocation6 + $0x1c0] sm:$0xff]
        %v380 = vld [vmem:[#allocation6 + $0x1c8] sm:$0xff]
        %v381 = vld [vmem:[#allocation6 + $0x1d0] sm:$0xff]
        %v382 = vld [vmem:[#allocation6 + $0x1d8] sm:$0xff]
        %v383 = vld [vmem:[#allocation6 + $0x1e0] sm:$0xff]
        %v384 = vld [vmem:[#allocation6 + $0x1e8] sm:$0xff]
        %v385 = vld [vmem:[#allocation6 + $0x1f0] sm:$0xff]
        %v386 = vld [vmem:[#allocation6 + $0x1f8] sm:$0xff]
        %v387 = vld [vmem:[#allocation6 + $0x200] sm:$0xff]
        %v388 = vld [vmem:[#allocation6 + $0x208] sm:$0xff]
        %v389 = vld [vmem:[#allocation6 + $0x210] sm:$0xff]
        %v390 = vld [vmem:[#allocation6 + $0x218] sm:$0xff]
        %v391 = vld [vmem:[#allocation6 + $0x220] sm:$0xff]
        %v392 = vld [vmem:[#allocation6 + $0x228] sm:$0xff]
        %v393 = vld [vmem:[#allocation6 + $0x230] sm:$0xff]
        %v394 = vld [vmem:[#allocation6 + $0x238] sm:$0xff]
        %v395 = vld [vmem:[#allocation6 + $0x240] sm:$0xff]
        %v396 = vld [vmem:[#allocation6 + $0x248] sm:$0xff]
        %v397 = vld [vmem:[#allocation6 + $0x250] sm:$0xff]
        %v398 = vld [vmem:[#allocation6 + $0x258] sm:$0xff]
        %v399 = vld [vmem:[#allocation6 + $0x260] sm:$0xff]
        %v400 = vld [vmem:[#allocation6 + $0x268] sm:$0xff]
        %v401 = vld [vmem:[#allocation6 + $0x270] sm:$0xff]
        %v402 = vld [vmem:[#allocation6 + $0x278] sm:$0xff]
        %v403 = vld [vmem:[#allocation6 + $0x280] sm:$0xff]
        %v404 = vld [vmem:[#allocation6 + $0x288] sm:$0xff]
        %v405 = vld [vmem:[#allocation6 + $0x290] sm:$0xff]
        %v406 = vld [vmem:[#allocation6 + $0x298] sm:$0xff]
        %v407 = vld [vmem:[#allocation6 + $0x2a0] sm:$0xff]
        %v408 = vld [vmem:[#allocation6 + $0x2a8] sm:$0xff]
        %v409 = vld [vmem:[#allocation6 + $0x2b0] sm:$0xff]
        %v410 = vld [vmem:[#allocation6 + $0x2b8] sm:$0xff]
        %v411 = vld [vmem:[#allocation6 + $0x2c0] sm:$0xff]
        %v412 = vld [vmem:[#allocation6 + $0x2c8] sm:$0xff]
        %v413 = vld [vmem:[#allocation6 + $0x2d0] sm:$0xff]
        %v414 = vld [vmem:[#allocation6 + $0x2d8] sm:$0xff]
        %v415 = vld [vmem:[#allocation6 + $0x2e0] sm:$0xff]
        %v416 = vld [vmem:[#allocation6 + $0x2e8] sm:$0xff]
        %v417 = vld [vmem:[#allocation6 + $0x2f0] sm:$0xff]
        %v418 = vld [vmem:[#allocation6 + $0x2f8] sm:$0xff]
        %v419 = vld [vmem:[#allocation6 + $0x300] sm:$0xff]
        %v420 = vld [vmem:[#allocation6 + $0x308] sm:$0xff]
        %v421 = vld [vmem:[#allocation6 + $0x310] sm:$0xff]
        %v422 = vld [vmem:[#allocation6 + $0x318] sm:$0xff]
        %v423 = vld [vmem:[#allocation6 + $0x320] sm:$0xff]
        %v424 = vld [vmem:[#allocation6 + $0x328] sm:$0xff]
        %v425 = vld [vmem:[#allocation6 + $0x330] sm:$0xff]
        %v426 = vld [vmem:[#allocation6 + $0x338] sm:$0xff]
        %v427 = vld [vmem:[#allocation6 + $0x340] sm:$0xff]
        %v428 = vld [vmem:[#allocation6 + $0x348] sm:$0xff]
        %v429 = vld [vmem:[#allocation6 + $0x350] sm:$0xff]
        %v430 = vld [vmem:[#allocation6 + $0x358] sm:$0xff]
        %v431 = vld [vmem:[#allocation6 + $0x360] sm:$0xff]
        %v432 = vld [vmem:[#allocation6 + $0x368] sm:$0xff]
        %v433 = vld [vmem:[#allocation6 + $0x370] sm:$0xff]
        %v434 = vld [vmem:[#allocation6 + $0x378] sm:$0xff]
        %v435 = vld [vmem:[#allocation6 + $0x380] sm:$0xff]
        %v436 = vld [vmem:[#allocation6 + $0x388] sm:$0xff]
        %v437 = vld [vmem:[#allocation6 + $0x390] sm:$0xff]
        %v438 = vld [vmem:[#allocation6 + $0x398] sm:$0xff]
        %v439 = vld [vmem:[#allocation6 + $0x3a0] sm:$0xff]
        %v440 = vld [vmem:[#allocation6 + $0x3a8] sm:$0xff]
        %v441 = vld [vmem:[#allocation6 + $0x3b0] sm:$0xff]
        %v442 = vld [vmem:[#allocation6 + $0x3b8] sm:$0xff]
        %v443 = vld [vmem:[#allocation6 + $0x3c0] sm:$0xff]
        %v444 = vld [vmem:[#allocation6 + $0x3c8] sm:$0xff]
        %v445 = vld [vmem:[#allocation6 + $0x3d0] sm:$0xff]
        %v446 = vld [vmem:[#allocation6 + $0x3d8] sm:$0xff]
        %v447 = vld [vmem:[#allocation6 + $0x3e0] sm:$0xff]
        %v448 = vld [vmem:[#allocation6 + $0x3e8] sm:$0xff]
        %v449 = vld [vmem:[#allocation6 + $0x3f0] sm:$0xff]
        %v450 = vld [vmem:[#allocation6 + $0x3f8] sm:$0xff]
        %v579 = vunpack.c.l.b16 %v323
        %v580 = vunpack.c.h.b16 %v323
        %v581 = vunpack.c.l.b16 %v324
        %v582 = vunpack.c.h.b16 %v324
        %v583 = vunpack.c.l.b16 %v325
        %v584 = vunpack.c.h.b16 %v325
        %v585 = vunpack.c.l.b16 %v326
        %v586 = vunpack.c.h.b16 %v326
        %v587 = vunpack.c.l.b16 %v327
        %v588 = vunpack.c.h.b16 %v327
        %v589 = vunpack.c.l.b16 %v328
        %v590 = vunpack.c.h.b16 %v328
        %v591 = vunpack.c.l.b16 %v329
        %v592 = vunpack.c.h.b16 %v329
        %v593 = vunpack.c.l.b16 %v330
        %v594 = vunpack.c.h.b16 %v330
        %v595 = vunpack.c.l.b16 %v331
        %v596 = vunpack.c.h.b16 %v331
        %v597 = vunpack.c.l.b16 %v332
        %v598 = vunpack.c.h.b16 %v332
        %v599 = vunpack.c.l.b16 %v333
        %v600 = vunpack.c.h.b16 %v333
        %v601 = vunpack.c.l.b16 %v334
        %v602 = vunpack.c.h.b16 %v334
        %v603 = vunpack.c.l.b16 %v335
        %v604 = vunpack.c.h.b16 %v335
        %v605 = vunpack.c.l.b16 %v336
        %v606 = vunpack.c.h.b16 %v336
        %v607 = vunpack.c.l.b16 %v337
        %v608 = vunpack.c.h.b16 %v337
        %v609 = vunpack.c.l.b16 %v338
        %v610 = vunpack.c.h.b16 %v338
        %v611 = vunpack.c.l.b16 %v339
        %v612 = vunpack.c.h.b16 %v339
        %v613 = vunpack.c.l.b16 %v340
        %v614 = vunpack.c.h.b16 %v340
        %v615 = vunpack.c.l.b16 %v341
        %v616 = vunpack.c.h.b16 %v341
        %v617 = vunpack.c.l.b16 %v342
        %v618 = vunpack.c.h.b16 %v342
        %v619 = vunpack.c.l.b16 %v343
        %v620 = vunpack.c.h.b16 %v343
        %v621 = vunpack.c.l.b16 %v344
        %v622 = vunpack.c.h.b16 %v344
        %v623 = vunpack.c.l.b16 %v345
        %v624 = vunpack.c.h.b16 %v345
        %v625 = vunpack.c.l.b16 %v346
        %v626 = vunpack.c.h.b16 %v346
        %v627 = vunpack.c.l.b16 %v347
        %v628 = vunpack.c.h.b16 %v347
        %v629 = vunpack.c.l.b16 %v348
        %v630 = vunpack.c.h.b16 %v348
        %v631 = vunpack.c.l.b16 %v349
        %v632 = vunpack.c.h.b16 %v349
        %v633 = vunpack.c.l.b16 %v350
        %v634 = vunpack.c.h.b16 %v350
        %v635 = vunpack.c.l.b16 %v351
        %v636 = vunpack.c.h.b16 %v351
        %v637 = vunpack.c.l.b16 %v352
        %v638 = vunpack.c.h.b16 %v352
        %v639 = vunpack.c.l.b16 %v353
        %v640 = vunpack.c.h.b16 %v353
        %v641 = vunpack.c.l.b16 %v354
        %v642 = vunpack.c.h.b16 %v354
        %v643 = vunpack.c.l.b16 %v355
        %v644 = vunpack.c.h.b16 %v355
        %v645 = vunpack.c.l.b16 %v356
        %v646 = vunpack.c.h.b16 %v356
        %v647 = vunpack.c.l.b16 %v357
        %v648 = vunpack.c.h.b16 %v357
        %v649 = vunpack.c.l.b16 %v358
        %v650 = vunpack.c.h.b16 %v358
        %v651 = vunpack.c.l.b16 %v359
        %v652 = vunpack.c.h.b16 %v359
        %v653 = vunpack.c.l.b16 %v360
        %v654 = vunpack.c.h.b16 %v360
        %v655 = vunpack.c.l.b16 %v361
        %v656 = vunpack.c.h.b16 %v361
        %v657 = vunpack.c.l.b16 %v362
        %v658 = vunpack.c.h.b16 %v362
        %v659 = vunpack.c.l.b16 %v363
        %v660 = vunpack.c.h.b16 %v363
        %v661 = vunpack.c.l.b16 %v364
        %v662 = vunpack.c.h.b16 %v364
        %v663 = vunpack.c.l.b16 %v365
        %v664 = vunpack.c.h.b16 %v365
        %v665 = vunpack.c.l.b16 %v366
        %v666 = vunpack.c.h.b16 %v366
        %v667 = vunpack.c.l.b16 %v367
        %v668 = vunpack.c.h.b16 %v367
        %v669 = vunpack.c.l.b16 %v368
        %v670 = vunpack.c.h.b16 %v368
        %v671 = vunpack.c.l.b16 %v369
        %v672 = vunpack.c.h.b16 %v369
        %v673 = vunpack.c.l.b16 %v370
        %v674 = vunpack.c.h.b16 %v370
        %v675 = vunpack.c.l.b16 %v371
        %v676 = vunpack.c.h.b16 %v371
        %v677 = vunpack.c.l.b16 %v372
        %v678 = vunpack.c.h.b16 %v372
        %v679 = vunpack.c.l.b16 %v373
        %v680 = vunpack.c.h.b16 %v373
        %v681 = vunpack.c.l.b16 %v374
        %v682 = vunpack.c.h.b16 %v374
        %v683 = vunpack.c.l.b16 %v375
        %v684 = vunpack.c.h.b16 %v375
        %v685 = vunpack.c.l.b16 %v376
        %v686 = vunpack.c.h.b16 %v376
        %v687 = vunpack.c.l.b16 %v377
        %v688 = vunpack.c.h.b16 %v377
        %v689 = vunpack.c.l.b16 %v378
        %v690 = vunpack.c.h.b16 %v378
        %v691 = vunpack.c.l.b16 %v379
        %v692 = vunpack.c.h.b16 %v379
        %v693 = vunpack.c.l.b16 %v380
        %v694 = vunpack.c.h.b16 %v380
        %v695 = vunpack.c.l.b16 %v381
        %v696 = vunpack.c.h.b16 %v381
        %v697 = vunpack.c.l.b16 %v382
        %v698 = vunpack.c.h.b16 %v382
        %v699 = vunpack.c.l.b16 %v383
        %v700 = vunpack.c.h.b16 %v383
        %v701 = vunpack.c.l.b16 %v384
        %v702 = vunpack.c.h.b16 %v384
        %v703 = vunpack.c.l.b16 %v385
        %v704 = vunpack.c.h.b16 %v385
        %v705 = vunpack.c.l.b16 %v386
        %v706 = vunpack.c.h.b16 %v386
        %v707 = vunpack.c.l.b16 %v387
        %v708 = vunpack.c.h.b16 %v387
        %v709 = vunpack.c.l.b16 %v388
        %v710 = vunpack.c.h.b16 %v388
        %v711 = vunpack.c.l.b16 %v389
        %v712 = vunpack.c.h.b16 %v389
        %v713 = vunpack.c.l.b16 %v390
        %v714 = vunpack.c.h.b16 %v390
        %v715 = vunpack.c.l.b16 %v391
        %v716 = vunpack.c.h.b16 %v391
        %v717 = vunpack.c.l.b16 %v392
        %v718 = vunpack.c.h.b16 %v392
        %v719 = vunpack.c.l.b16 %v393
        %v720 = vunpack.c.h.b16 %v393
        %v721 = vunpack.c.l.b16 %v394
        %v722 = vunpack.c.h.b16 %v394
        %v723 = vunpack.c.l.b16 %v395
        %v724 = vunpack.c.h.b16 %v395
        %v725 = vunpack.c.l.b16 %v396
        %v726 = vunpack.c.h.b16 %v396
        %v727 = vunpack.c.l.b16 %v397
        %v728 = vunpack.c.h.b16 %v397
        %v729 = vunpack.c.l.b16 %v398
        %v730 = vunpack.c.h.b16 %v398
        %v731 = vunpack.c.l.b16 %v399
        %v732 = vunpack.c.h.b16 %v399
        %v733 = vunpack.c.l.b16 %v400
        %v734 = vunpack.c.h.b16 %v400
        %v735 = vunpack.c.l.b16 %v401
        %v736 = vunpack.c.h.b16 %v401
        %v737 = vunpack.c.l.b16 %v402
        %v738 = vunpack.c.h.b16 %v402
        %v739 = vunpack.c.l.b16 %v403
        %v740 = vunpack.c.h.b16 %v403
        %v741 = vunpack.c.l.b16 %v404
        %v742 = vunpack.c.h.b16 %v404
        %v743 = vunpack.c.l.b16 %v405
        %v744 = vunpack.c.h.b16 %v405
        %v745 = vunpack.c.l.b16 %v406
        %v746 = vunpack.c.h.b16 %v406
        %v747 = vunpack.c.l.b16 %v407
        %v748 = vunpack.c.h.b16 %v407
        %v749 = vunpack.c.l.b16 %v408
        %v750 = vunpack.c.h.b16 %v408
        %v751 = vunpack.c.l.b16 %v409
        %v752 = vunpack.c.h.b16 %v409
        %v753 = vunpack.c.l.b16 %v410
        %v754 = vunpack.c.h.b16 %v410
        %v755 = vunpack.c.l.b16 %v411
        %v756 = vunpack.c.h.b16 %v411
        %v757 = vunpack.c.l.b16 %v412
        %v758 = vunpack.c.h.b16 %v412
        %v759 = vunpack.c.l.b16 %v413
        %v760 = vunpack.c.h.b16 %v413
        %v761 = vunpack.c.l.b16 %v414
        %v762 = vunpack.c.h.b16 %v414
        %v763 = vunpack.c.l.b16 %v415
        %v764 = vunpack.c.h.b16 %v415
        %v765 = vunpack.c.l.b16 %v416
        %v766 = vunpack.c.h.b16 %v416
        %v767 = vunpack.c.l.b16 %v417
        %v768 = vunpack.c.h.b16 %v417
        %v769 = vunpack.c.l.b16 %v418
        %v770 = vunpack.c.h.b16 %v418
        %v771 = vunpack.c.l.b16 %v419
        %v772 = vunpack.c.h.b16 %v419
        %v773 = vunpack.c.l.b16 %v420
        %v774 = vunpack.c.h.b16 %v420
        %v775 = vunpack.c.l.b16 %v421
        %v776 = vunpack.c.h.b16 %v421
        %v777 = vunpack.c.l.b16 %v422
        %v778 = vunpack.c.h.b16 %v422
        %v779 = vunpack.c.l.b16 %v423
        %v780 = vunpack.c.h.b16 %v423
        %v781 = vunpack.c.l.b16 %v424
        %v782 = vunpack.c.h.b16 %v424
        %v783 = vunpack.c.l.b16 %v425
        %v784 = vunpack.c.h.b16 %v425
        %v785 = vunpack.c.l.b16 %v426
        %v786 = vunpack.c.h.b16 %v426
        %v787 = vunpack.c.l.b16 %v427
        %v788 = vunpack.c.h.b16 %v427
        %v789 = vunpack.c.l.b16 %v428
        %v790 = vunpack.c.h.b16 %v428
        %v791 = vunpack.c.l.b16 %v429
        %v792 = vunpack.c.h.b16 %v429
        %v793 = vunpack.c.l.b16 %v430
        %v794 = vunpack.c.h.b16 %v430
        %v795 = vunpack.c.l.b16 %v431
        %v796 = vunpack.c.h.b16 %v431
        %v797 = vunpack.c.l.b16 %v432
        %v798 = vunpack.c.h.b16 %v432
        %v799 = vunpack.c.l.b16 %v433
        %v800 = vunpack.c.h.b16 %v433
        %v801 = vunpack.c.l.b16 %v434
        %v802 = vunpack.c.h.b16 %v434
        %v803 = vunpack.c.l.b16 %v435
        %v804 = vunpack.c.h.b16 %v435
        %v805 = vunpack.c.l.b16 %v436
        %v806 = vunpack.c.h.b16 %v436
        %v807 = vunpack.c.l.b16 %v437
        %v808 = vunpack.c.h.b16 %v437
        %v809 = vunpack.c.l.b16 %v438
        %v810 = vunpack.c.h.b16 %v438
        %v811 = vunpack.c.l.b16 %v439
        %v812 = vunpack.c.h.b16 %v439
        %v813 = vunpack.c.l.b16 %v440
        %v814 = vunpack.c.h.b16 %v440
        %v815 = vunpack.c.l.b16 %v441
        %v816 = vunpack.c.h.b16 %v441
        %v817 = vunpack.c.l.b16 %v442
        %v818 = vunpack.c.h.b16 %v442
        %v819 = vunpack.c.l.b16 %v443
        %v820 = vunpack.c.h.b16 %v443
        %v821 = vunpack.c.l.b16 %v444
        %v822 = vunpack.c.h.b16 %v444
        %v823 = vunpack.c.l.b16 %v445
        %v824 = vunpack.c.h.b16 %v445
        %v825 = vunpack.c.l.b16 %v446
        %v826 = vunpack.c.h.b16 %v446
        %v827 = vunpack.c.l.b16 %v447
        %v828 = vunpack.c.h.b16 %v447
        %v829 = vunpack.c.l.b16 %v448
        %v830 = vunpack.c.h.b16 %v448
        %v831 = vunpack.c.l.b16 %v449
        %v832 = vunpack.c.h.b16 %v449
        %v833 = vunpack.c.l.b16 %v450
        %v834 = vunpack.c.h.b16 %v450
        %v835 = vpack.c.b16 %v581, %v579
        %v836 = vpack.c.b16 %v582, %v580
        %v837 = vpack.c.b16 %v585, %v583
        %v838 = vpack.c.b16 %v586, %v584
        %v839 = vpack.c.b16 %v589, %v587
        %v840 = vpack.c.b16 %v590, %v588
        %v841 = vpack.c.b16 %v593, %v591
        %v842 = vpack.c.b16 %v594, %v592
        %v843 = vpack.c.b16 %v597, %v595
        %v844 = vpack.c.b16 %v598, %v596
        %v845 = vpack.c.b16 %v601, %v599
        %v846 = vpack.c.b16 %v602, %v600
        %v847 = vpack.c.b16 %v605, %v603
        %v848 = vpack.c.b16 %v606, %v604
        %v849 = vpack.c.b16 %v609, %v607
        %v850 = vpack.c.b16 %v610, %v608
        %v851 = vpack.c.b16 %v613, %v611
        %v852 = vpack.c.b16 %v614, %v612
        %v853 = vpack.c.b16 %v617, %v615
        %v854 = vpack.c.b16 %v618, %v616
        %v855 = vpack.c.b16 %v621, %v619
        %v856 = vpack.c.b16 %v622, %v620
        %v857 = vpack.c.b16 %v625, %v623
        %v858 = vpack.c.b16 %v626, %v624
        %v859 = vpack.c.b16 %v629, %v627
        %v860 = vpack.c.b16 %v630, %v628
        %v861 = vpack.c.b16 %v633, %v631
        %v862 = vpack.c.b16 %v634, %v632
        %v863 = vpack.c.b16 %v637, %v635
        %v864 = vpack.c.b16 %v638, %v636
        %v865 = vpack.c.b16 %v641, %v639
        %v866 = vpack.c.b16 %v642, %v640
        %v867 = vpack.c.b16 %v645, %v643
        %v868 = vpack.c.b16 %v646, %v644
        %v869 = vpack.c.b16 %v649, %v647
        %v870 = vpack.c.b16 %v650, %v648
        %v871 = vpack.c.b16 %v653, %v651
        %v872 = vpack.c.b16 %v654, %v652
        %v873 = vpack.c.b16 %v657, %v655
        %v874 = vpack.c.b16 %v658, %v656
        %v875 = vpack.c.b16 %v661, %v659
        %v876 = vpack.c.b16 %v662, %v660
        %v877 = vpack.c.b16 %v665, %v663
        %v878 = vpack.c.b16 %v666, %v664
        %v879 = vpack.c.b16 %v669, %v667
        %v880 = vpack.c.b16 %v670, %v668
        %v881 = vpack.c.b16 %v673, %v671
        %v882 = vpack.c.b16 %v674, %v672
        %v883 = vpack.c.b16 %v677, %v675
        %v884 = vpack.c.b16 %v678, %v676
        %v885 = vpack.c.b16 %v681, %v679
        %v886 = vpack.c.b16 %v682, %v680
        %v887 = vpack.c.b16 %v685, %v683
        %v888 = vpack.c.b16 %v686, %v684
        %v889 = vpack.c.b16 %v689, %v687
        %v890 = vpack.c.b16 %v690, %v688
        %v891 = vpack.c.b16 %v693, %v691
        %v892 = vpack.c.b16 %v694, %v692
        %v893 = vpack.c.b16 %v697, %v695
        %v894 = vpack.c.b16 %v698, %v696
        %v895 = vpack.c.b16 %v701, %v699
        %v896 = vpack.c.b16 %v702, %v700
        %v897 = vpack.c.b16 %v705, %v703
        %v898 = vpack.c.b16 %v706, %v704
        %v899 = vpack.c.b16 %v709, %v707
        %v900 = vpack.c.b16 %v710, %v708
        %v901 = vpack.c.b16 %v713, %v711
        %v902 = vpack.c.b16 %v714, %v712
        %v903 = vpack.c.b16 %v717, %v715
        %v904 = vpack.c.b16 %v718, %v716
        %v905 = vpack.c.b16 %v721, %v719
        %v906 = vpack.c.b16 %v722, %v720
        %v907 = vpack.c.b16 %v725, %v723
        %v908 = vpack.c.b16 %v726, %v724
        %v909 = vpack.c.b16 %v729, %v727
        %v910 = vpack.c.b16 %v730, %v728
        %v911 = vpack.c.b16 %v733, %v731
        %v912 = vpack.c.b16 %v734, %v732
        %v913 = vpack.c.b16 %v737, %v735
        %v914 = vpack.c.b16 %v738, %v736
        %v915 = vpack.c.b16 %v741, %v739
        %v916 = vpack.c.b16 %v742, %v740
        %v917 = vpack.c.b16 %v745, %v743
        %v918 = vpack.c.b16 %v746, %v744
        %v919 = vpack.c.b16 %v749, %v747
        %v920 = vpack.c.b16 %v750, %v748
        %v921 = vpack.c.b16 %v753, %v751
        %v922 = vpack.c.b16 %v754, %v752
        %v923 = vpack.c.b16 %v757, %v755
        %v924 = vpack.c.b16 %v758, %v756
        %v925 = vpack.c.b16 %v761, %v759
        %v926 = vpack.c.b16 %v762, %v760
        %v927 = vpack.c.b16 %v765, %v763
        %v928 = vpack.c.b16 %v766, %v764
        %v929 = vpack.c.b16 %v769, %v767
        %v930 = vpack.c.b16 %v770, %v768
        %v931 = vpack.c.b16 %v773, %v771
        %v932 = vpack.c.b16 %v774, %v772
        %v933 = vpack.c.b16 %v777, %v775
        %v934 = vpack.c.b16 %v778, %v776
        %v935 = vpack.c.b16 %v781, %v779
        %v936 = vpack.c.b16 %v782, %v780
        %v937 = vpack.c.b16 %v785, %v783
        %v938 = vpack.c.b16 %v786, %v784
        %v939 = vpack.c.b16 %v789, %v787
        %v940 = vpack.c.b16 %v790, %v788
        %v941 = vpack.c.b16 %v793, %v791
        %v942 = vpack.c.b16 %v794, %v792
        %v943 = vpack.c.b16 %v797, %v795
        %v944 = vpack.c.b16 %v798, %v796
        %v945 = vpack.c.b16 %v801, %v799
        %v946 = vpack.c.b16 %v802, %v800
        %v947 = vpack.c.b16 %v805, %v803
        %v948 = vpack.c.b16 %v806, %v804
        %v949 = vpack.c.b16 %v809, %v807
        %v950 = vpack.c.b16 %v810, %v808
        %v951 = vpack.c.b16 %v813, %v811
        %v952 = vpack.c.b16 %v814, %v812
        %v953 = vpack.c.b16 %v817, %v815
        %v954 = vpack.c.b16 %v818, %v816
        %v955 = vpack.c.b16 %v821, %v819
        %v956 = vpack.c.b16 %v822, %v820
        %v957 = vpack.c.b16 %v825, %v823
        %v958 = vpack.c.b16 %v826, %v824
        %v959 = vpack.c.b16 %v829, %v827
        %v960 = vpack.c.b16 %v830, %v828
        %v961 = vpack.c.b16 %v833, %v831
        %v962 = vpack.c.b16 %v834, %v832
        %1091 = vmatpush.bf16.msra.mxu0 %v849
        %1092 = vmatpush.bf16.msra.mxu0 %v847
        %1093 = vmatpush.bf16.msra.mxu0 %v845
        %1094 = vmatpush.bf16.msra.mxu0 %v843
        %1095 = vmatpush.bf16.msra.mxu0 %v841
        %1096 = vmatpush.bf16.msra.mxu0 %v839
        %1097 = vmatpush.bf16.msra.mxu0 %v837
        %1098 = vmatpush.bf16.msra.mxu0 %v835
        %1099 = vmatmul.bf16.gmra.mxu0 %v307
        %v1100 = vpop.f32.mrf.mxu0
        %v1101 = vadd.f32 0.0, %v1100
        %v1102 = vpop.f32.mrf.mxu0
        %v1103 = vadd.f32 0.0, %v1102
        %1104 = vmatmul.bf16.gmra.mxu0 %v315
        %v1105 = vpop.f32.mrf.mxu0
        %v1106 = vadd.f32 0.0, %v1105
        %v1107 = vpop.f32.mrf.mxu0
        %v1108 = vadd.f32 0.0, %v1107
        %1109 = vdwg.mxu0
        %1110 = vmatpush.bf16.msra.mxu0 %v865
        %1111 = vmatpush.bf16.msra.mxu0 %v863
        %1112 = vmatpush.bf16.msra.mxu0 %v861
        %1113 = vmatpush.bf16.msra.mxu0 %v859
        %1114 = vmatpush.bf16.msra.mxu0 %v857
        %1115 = vmatpush.bf16.msra.mxu0 %v855
        %1116 = vmatpush.bf16.msra.mxu0 %v853
        %1117 = vmatpush.bf16.msra.mxu0 %v851
        %1118 = vmatmul.bf16.gmra.mxu0 %v308
        %v1119 = vpop.f32.mrf.mxu0
        %v1120 = vadd.f32 %v1101, %v1119
        %v1121 = vpop.f32.mrf.mxu0
        %v1122 = vadd.f32 %v1103, %v1121
        %1123 = vmatmul.bf16.gmra.mxu0 %v316
        %v1124 = vpop.f32.mrf.mxu0
        %v1125 = vadd.f32 %v1106, %v1124
        %v1126 = vpop.f32.mrf.mxu0
        %v1127 = vadd.f32 %v1108, %v1126
        %1128 = vdwg.mxu0
        %1129 = vmatpush.bf16.msra.mxu0 %v881
        %1130 = vmatpush.bf16.msra.mxu0 %v879
        %1131 = vmatpush.bf16.msra.mxu0 %v877
        %1132 = vmatpush.bf16.msra.mxu0 %v875
        %1133 = vmatpush.bf16.msra.mxu0 %v873
        %1134 = vmatpush.bf16.msra.mxu0 %v871
        %1135 = vmatpush.bf16.msra.mxu0 %v869
        %1136 = vmatpush.bf16.msra.mxu0 %v867
        %1137 = vmatmul.bf16.gmra.mxu0 %v309
        %v1138 = vpop.f32.mrf.mxu0
        %v1139 = vadd.f32 %v1120, %v1138
        %v1140 = vpop.f32.mrf.mxu0
        %v1141 = vadd.f32 %v1122, %v1140
        %1142 = vmatmul.bf16.gmra.mxu0 %v317
        %v1143 = vpop.f32.mrf.mxu0
        %v1144 = vadd.f32 %v1125, %v1143
        %v1145 = vpop.f32.mrf.mxu0
        %v1146 = vadd.f32 %v1127, %v1145
        %1147 = vdwg.mxu0
        %1148 = vmatpush.bf16.msra.mxu0 %v897
        %1149 = vmatpush.bf16.msra.mxu0 %v895
        %1150 = vmatpush.bf16.msra.mxu0 %v893
        %1151 = vmatpush.bf16.msra.mxu0 %v891
        %1152 = vmatpush.bf16.msra.mxu0 %v889
        %1153 = vmatpush.bf16.msra.mxu0 %v887
        %1154 = vmatpush.bf16.msra.mxu0 %v885
        %1155 = vmatpush.bf16.msra.mxu0 %v883
        %1156 = vmatmul.bf16.gmra.mxu0 %v310
        %v1157 = vpop.f32.mrf.mxu0
        %v1158 = vadd.f32 %v1139, %v1157
        %v1159 = vpop.f32.mrf.mxu0
        %v1160 = vadd.f32 %v1141, %v1159
        %1161 = vmatmul.bf16.gmra.mxu0 %v318
        %v1162 = vpop.f32.mrf.mxu0
        %v1163 = vadd.f32 %v1144, %v1162
        %v1164 = vpop.f32.mrf.mxu0
        %v1165 = vadd.f32 %v1146, %v1164
        %1166 = vdwg.mxu0
        %1167 = vmatpush.bf16.msra.mxu0 %v913
        %1168 = vmatpush.bf16.msra.mxu0 %v911
        %1169 = vmatpush.bf16.msra.mxu0 %v909
        %1170 = vmatpush.bf16.msra.mxu0 %v907
        %1171 = vmatpush.bf16.msra.mxu0 %v905
        %1172 = vmatpush.bf16.msra.mxu0 %v903
        %1173 = vmatpush.bf16.msra.mxu0 %v901
        %1174 = vmatpush.bf16.msra.mxu0 %v899
        %1175 = vmatmul.bf16.gmra.mxu0 %v311
        %v1176 = vpop.f32.mrf.mxu0
        %v1177 = vadd.f32 %v1158, %v1176
        %v1178 = vpop.f32.mrf.mxu0
        %v1179 = vadd.f32 %v1160, %v1178
        %1180 = vmatmul.bf16.gmra.mxu0 %v319
        %v1181 = vpop.f32.mrf.mxu0
        %v1182 = vadd.f32 %v1163, %v1181
        %v1183 = vpop.f32.mrf.mxu0
        %v1184 = vadd.f32 %v1165, %v1183
        %1185 = vdwg.mxu0
        %1186 = vmatpush.bf16.msra.mxu0 %v929
        %1187 = vmatpush.bf16.msra.mxu0 %v927
        %1188 = vmatpush.bf16.msra.mxu0 %v925
        %1189 = vmatpush.bf16.msra.mxu0 %v923
        %1190 = vmatpush.bf16.msra.mxu0 %v921
        %1191 = vmatpush.bf16.msra.mxu0 %v919
        %1192 = vmatpush.bf16.msra.mxu0 %v917
        %1193 = vmatpush.bf16.msra.mxu0 %v915
        %1194 = vmatmul.bf16.gmra.mxu0 %v312
        %v1195 = vpop.f32.mrf.mxu0
        %v1196 = vadd.f32 %v1177, %v1195
        %v1197 = vpop.f32.mrf.mxu0
        %v1198 = vadd.f32 %v1179, %v1197
        %1199 = vmatmul.bf16.gmra.mxu0 %v320
        %v1200 = vpop.f32.mrf.mxu0
        %v1201 = vadd.f32 %v1182, %v1200
        %v1202 = vpop.f32.mrf.mxu0
        %v1203 = vadd.f32 %v1184, %v1202
        %1204 = vdwg.mxu0
        %1205 = vmatpush.bf16.msra.mxu0 %v945
        %1206 = vmatpush.bf16.msra.mxu0 %v943
        %1207 = vmatpush.bf16.msra.mxu0 %v941
        %1208 = vmatpush.bf16.msra.mxu0 %v939
        %1209 = vmatpush.bf16.msra.mxu0 %v937
        %1210 = vmatpush.bf16.msra.mxu0 %v935
        %1211 = vmatpush.bf16.msra.mxu0 %v933
        %1212 = vmatpush.bf16.msra.mxu0 %v931
        %1213 = vmatmul.bf16.gmra.mxu0 %v313
        %v1214 = vpop.f32.mrf.mxu0
        %v1215 = vadd.f32 %v1196, %v1214
        %v1216 = vpop.f32.mrf.mxu0
        %v1217 = vadd.f32 %v1198, %v1216
        %1218 = vmatmul.bf16.gmra.mxu0 %v321
        %v1219 = vpop.f32.mrf.mxu0
        %v1220 = vadd.f32 %v1201, %v1219
        %v1221 = vpop.f32.mrf.mxu0
        %v1222 = vadd.f32 %v1203, %v1221
        %1223 = vdwg.mxu0
        %1224 = vmatpush.bf16.msra.mxu0 %v961
        %1225 = vmatpush.bf16.msra.mxu0 %v959
        %1226 = vmatpush.bf16.msra.mxu0 %v957
        %1227 = vmatpush.bf16.msra.mxu0 %v955
        %1228 = vmatpush.bf16.msra.mxu0 %v953
        %1229 = vmatpush.bf16.msra.mxu0 %v951
        %1230 = vmatpush.bf16.msra.mxu0 %v949
        %1231 = vmatpush.bf16.msra.mxu0 %v947
        %1232 = vmatmul.bf16.gmra.mxu0 %v314
        %v1233 = vpop.f32.mrf.mxu0
        %v1234 = vadd.f32 %v1215, %v1233
        %v1235 = vpop.f32.mrf.mxu0
        %v1236 = vadd.f32 %v1217, %v1235
        %1237 = vmatmul.bf16.gmra.mxu0 %v322
        %v1238 = vpop.f32.mrf.mxu0
        %v1239 = vadd.f32 %v1220, %v1238
        %v1240 = vpop.f32.mrf.mxu0
        %v1241 = vadd.f32 %v1222, %v1240
        %1242 = vdwg.mxu0
        %1243 = vmatpush.bf16.msra.mxu0 %v850
        %1244 = vmatpush.bf16.msra.mxu0 %v848
        %1245 = vmatpush.bf16.msra.mxu0 %v846
        %1246 = vmatpush.bf16.msra.mxu0 %v844
        %1247 = vmatpush.bf16.msra.mxu0 %v842
        %1248 = vmatpush.bf16.msra.mxu0 %v840
        %1249 = vmatpush.bf16.msra.mxu0 %v838
        %1250 = vmatpush.bf16.msra.mxu0 %v836
        %1251 = vmatmul.bf16.gmra.mxu0 %v307
        %v1252 = vpop.f32.mrf.mxu0
        %v1253 = vadd.f32 0.0, %v1252
        %v1254 = vpop.f32.mrf.mxu0
        %v1255 = vadd.f32 0.0, %v1254
        %1256 = vmatmul.bf16.gmra.mxu0 %v315
        %v1257 = vpop.f32.mrf.mxu0
        %v1258 = vadd.f32 0.0, %v1257
        %v1259 = vpop.f32.mrf.mxu0
        %v1260 = vadd.f32 0.0, %v1259
        %1261 = vdwg.mxu0
        %1262 = vmatpush.bf16.msra.mxu0 %v866
        %1263 = vmatpush.bf16.msra.mxu0 %v864
        %1264 = vmatpush.bf16.msra.mxu0 %v862
        %1265 = vmatpush.bf16.msra.mxu0 %v860
        %1266 = vmatpush.bf16.msra.mxu0 %v858
        %1267 = vmatpush.bf16.msra.mxu0 %v856
        %1268 = vmatpush.bf16.msra.mxu0 %v854
        %1269 = vmatpush.bf16.msra.mxu0 %v852
        %1270 = vmatmul.bf16.gmra.mxu0 %v308
        %v1271 = vpop.f32.mrf.mxu0
        %v1272 = vadd.f32 %v1253, %v1271
        %v1273 = vpop.f32.mrf.mxu0
        %v1274 = vadd.f32 %v1255, %v1273
        %1275 = vmatmul.bf16.gmra.mxu0 %v316
        %v1276 = vpop.f32.mrf.mxu0
        %v1277 = vadd.f32 %v1258, %v1276
        %v1278 = vpop.f32.mrf.mxu0
        %v1279 = vadd.f32 %v1260, %v1278
        %1280 = vdwg.mxu0
        %1281 = vmatpush.bf16.msra.mxu0 %v882
        %1282 = vmatpush.bf16.msra.mxu0 %v880
        %1283 = vmatpush.bf16.msra.mxu0 %v878
        %1284 = vmatpush.bf16.msra.mxu0 %v876
        %1285 = vmatpush.bf16.msra.mxu0 %v874
        %1286 = vmatpush.bf16.msra.mxu0 %v872
        %1287 = vmatpush.bf16.msra.mxu0 %v870
        %1288 = vmatpush.bf16.msra.mxu0 %v868
        %1289 = vmatmul.bf16.gmra.mxu0 %v309
        %v1290 = vpop.f32.mrf.mxu0
        %v1291 = vadd.f32 %v1272, %v1290
        %v1292 = vpop.f32.mrf.mxu0
        %v1293 = vadd.f32 %v1274, %v1292
        %1294 = vmatmul.bf16.gmra.mxu0 %v317
        %v1295 = vpop.f32.mrf.mxu0
        %v1296 = vadd.f32 %v1277, %v1295
        %v1297 = vpop.f32.mrf.mxu0
        %v1298 = vadd.f32 %v1279, %v1297
        %1299 = vdwg.mxu0
        %1300 = vmatpush.bf16.msra.mxu0 %v898
        %1301 = vmatpush.bf16.msra.mxu0 %v896
        %1302 = vmatpush.bf16.msra.mxu0 %v894
        %1303 = vmatpush.bf16.msra.mxu0 %v892
        %1304 = vmatpush.bf16.msra.mxu0 %v890
        %1305 = vmatpush.bf16.msra.mxu0 %v888
        %1306 = vmatpush.bf16.msra.mxu0 %v886
        %1307 = vmatpush.bf16.msra.mxu0 %v884
        %1308 = vmatmul.bf16.gmra.mxu0 %v310
        %v1309 = vpop.f32.mrf.mxu0
        %v1310 = vadd.f32 %v1291, %v1309
        %v1311 = vpop.f32.mrf.mxu0
        %v1312 = vadd.f32 %v1293, %v1311
        %1313 = vmatmul.bf16.gmra.mxu0 %v318
        %v1314 = vpop.f32.mrf.mxu0
        %v1315 = vadd.f32 %v1296, %v1314
        %v1316 = vpop.f32.mrf.mxu0
        %v1317 = vadd.f32 %v1298, %v1316
        %1318 = vdwg.mxu0
        %1319 = vmatpush.bf16.msra.mxu0 %v914
        %1320 = vmatpush.bf16.msra.mxu0 %v912
        %1321 = vmatpush.bf16.msra.mxu0 %v910
        %1322 = vmatpush.bf16.msra.mxu0 %v908
        %1323 = vmatpush.bf16.msra.mxu0 %v906
        %1324 = vmatpush.bf16.msra.mxu0 %v904
        %1325 = vmatpush.bf16.msra.mxu0 %v902
        %1326 = vmatpush.bf16.msra.mxu0 %v900
        %1327 = vmatmul.bf16.gmra.mxu0 %v311
        %v1328 = vpop.f32.mrf.mxu0
        %v1329 = vadd.f32 %v1310, %v1328
        %v1330 = vpop.f32.mrf.mxu0
        %v1331 = vadd.f32 %v1312, %v1330
        %1332 = vmatmul.bf16.gmra.mxu0 %v319
        %v1333 = vpop.f32.mrf.mxu0
        %v1334 = vadd.f32 %v1315, %v1333
        %v1335 = vpop.f32.mrf.mxu0
        %v1336 = vadd.f32 %v1317, %v1335
        %1337 = vdwg.mxu0
        %1338 = vmatpush.bf16.msra.mxu0 %v930
        %1339 = vmatpush.bf16.msra.mxu0 %v928
        %1340 = vmatpush.bf16.msra.mxu0 %v926
        %1341 = vmatpush.bf16.msra.mxu0 %v924
        %1342 = vmatpush.bf16.msra.mxu0 %v922
        %1343 = vmatpush.bf16.msra.mxu0 %v920
        %1344 = vmatpush.bf16.msra.mxu0 %v918
        %1345 = vmatpush.bf16.msra.mxu0 %v916
        %1346 = vmatmul.bf16.gmra.mxu0 %v312
        %v1347 = vpop.f32.mrf.mxu0
        %v1348 = vadd.f32 %v1329, %v1347
        %v1349 = vpop.f32.mrf.mxu0
        %v1350 = vadd.f32 %v1331, %v1349
        %1351 = vmatmul.bf16.gmra.mxu0 %v320
        %v1352 = vpop.f32.mrf.mxu0
        %v1353 = vadd.f32 %v1334, %v1352
        %v1354 = vpop.f32.mrf.mxu0
        %v1355 = vadd.f32 %v1336, %v1354
        %1356 = vdwg.mxu0
        %1357 = vmatpush.bf16.msra.mxu0 %v946
        %1358 = vmatpush.bf16.msra.mxu0 %v944
        %1359 = vmatpush.bf16.msra.mxu0 %v942
        %1360 = vmatpush.bf16.msra.mxu0 %v940
        %1361 = vmatpush.bf16.msra.mxu0 %v938
        %1362 = vmatpush.bf16.msra.mxu0 %v936
        %1363 = vmatpush.bf16.msra.mxu0 %v934
        %1364 = vmatpush.bf16.msra.mxu0 %v932
        %1365 = vmatmul.bf16.gmra.mxu0 %v313
        %v1366 = vpop.f32.mrf.mxu0
        %v1367 = vadd.f32 %v1348, %v1366
        %v1368 = vpop.f32.mrf.mxu0
        %v1369 = vadd.f32 %v1350, %v1368
        %1370 = vmatmul.bf16.gmra.mxu0 %v321
        %v1371 = vpop.f32.mrf.mxu0
        %v1372 = vadd.f32 %v1353, %v1371
        %v1373 = vpop.f32.mrf.mxu0
        %v1374 = vadd.f32 %v1355, %v1373
        %1375 = vdwg.mxu0
        %1376 = vmatpush.bf16.msra.mxu0 %v962
        %1377 = vmatpush.bf16.msra.mxu0 %v960
        %1378 = vmatpush.bf16.msra.mxu0 %v958
        %1379 = vmatpush.bf16.msra.mxu0 %v956
        %1380 = vmatpush.bf16.msra.mxu0 %v954
        %1381 = vmatpush.bf16.msra.mxu0 %v952
        %1382 = vmatpush.bf16.msra.mxu0 %v950
        %1383 = vmatpush.bf16.msra.mxu0 %v948
        %1384 = vmatmul.bf16.gmra.mxu0 %v314
        %v1385 = vpop.f32.mrf.mxu0
        %v1386 = vadd.f32 %v1367, %v1385
        %v1387 = vpop.f32.mrf.mxu0
        %v1388 = vadd.f32 %v1369, %v1387
        %1389 = vmatmul.bf16.gmra.mxu0 %v322
        %v1390 = vpop.f32.mrf.mxu0
        %v1391 = vadd.f32 %v1372, %v1390
        %v1392 = vpop.f32.mrf.mxu0
        %v1393 = vadd.f32 %v1374, %v1392
        %1394 = vdwg.mxu0
        %p1395 = scmp.eq.s32.totalorder %s28, 0
        // Predicated region
        $region45: #{_forward.1} parent=31 // pred_check
          %p1396 = pneg %p1395
        $region46: #{_forward.1} parent=31 // pred_check_branch
          %1398 = sbr.rel (%p1396) target = $region48
        $region47: #{_forward.1} parent=31 // pred_region
          %1399 = vst [vmem:[#allocation2] sm:$0xff] %v1234
          %1400 = vst [vmem:[#allocation2 + $0x8] sm:$0xff] %v1386
          %1401 = vst [vmem:[#allocation2 + $0x10] sm:$0xff] %v1236
          %1402 = vst [vmem:[#allocation2 + $0x18] sm:$0xff] %v1388
          %1403 = vst [vmem:[#allocation2 + $0x20] sm:$0xff] %v1239
          %1404 = vst [vmem:[#allocation2 + $0x28] sm:$0xff] %v1391
          %1405 = vst [vmem:[#allocation2 + $0x30] sm:$0xff] %v1241
          %1406 = vst [vmem:[#allocation2 + $0x38] sm:$0xff] %v1393
        $region48: #{_forward.1} parent=31 // pred_fallthru
          _
        %p1407 = scmp.ne.s32.totalorder %s28, 0
        // Predicated region
        $region49: #{_forward.1} parent=31 // pred_check
          %p1408 = pneg %p1407
        $region50: #{_forward.1} parent=31 // pred_check_branch
          %1410 = sbr.rel (%p1408) target = $region52
        $region51: #{_forward.1} parent=31 // pred_region
          %v1411 = vld [vmem:[#allocation2] sm:$0xff]
          %v1412 = vld [vmem:[#allocation2 + $0x8] sm:$0xff]
          %v1413 = vld [vmem:[#allocation2 + $0x10] sm:$0xff]
          %v1414 = vld [vmem:[#allocation2 + $0x18] sm:$0xff]
          %v1415 = vld [vmem:[#allocation2 + $0x20] sm:$0xff]
          %v1416 = vld [vmem:[#allocation2 + $0x28] sm:$0xff]
          %v1417 = vld [vmem:[#allocation2 + $0x30] sm:$0xff]
          %v1418 = vld [vmem:[#allocation2 + $0x38] sm:$0xff]
          %v1419 = vadd.f32 %v1411, %v1234
          %v1420 = vadd.f32 %v1412, %v1386
          %v1421 = vadd.f32 %v1413, %v1236
          %v1422 = vadd.f32 %v1414, %v1388
          %v1423 = vadd.f32 %v1415, %v1239
          %v1424 = vadd.f32 %v1416, %v1391
          %v1425 = vadd.f32 %v1417, %v1241
          %v1426 = vadd.f32 %v1418, %v1393
          %1427 = vst [vmem:[#allocation2] sm:$0xff] %v1419
          %1428 = vst [vmem:[#allocation2 + $0x8] sm:$0xff] %v1420
          %1429 = vst [vmem:[#allocation2 + $0x10] sm:$0xff] %v1421
          %1430 = vst [vmem:[#allocation2 + $0x18] sm:$0xff] %v1422
          %1431 = vst [vmem:[#allocation2 + $0x20] sm:$0xff] %v1423
          %1432 = vst [vmem:[#allocation2 + $0x28] sm:$0xff] %v1424
          %1433 = vst [vmem:[#allocation2 + $0x30] sm:$0xff] %v1425
          %1434 = vst [vmem:[#allocation2 + $0x38] sm:$0xff] %v1426
        $region52: #{_forward.1} parent=31 // pred_fallthru
          _
        // Predicated region
        $region53: #{_forward.1} parent=31 // pred_check
          %p1435 = pneg %p1395
        $region54: #{_forward.1} parent=31 // pred_check_branch
          %1437 = sbr.rel (%p1435) target = $region56
        $region55: #{_forward.1} parent=31 // pred_region
          %v1438 = vld [vmem:[#allocation2] sm:$0xff]
          %v1439 = vld [vmem:[#allocation2 + $0x8] sm:$0xff]
          %v1440 = vld [vmem:[#allocation2 + $0x10] sm:$0xff]
          %v1441 = vld [vmem:[#allocation2 + $0x18] sm:$0xff]
          %v1442 = vld [vmem:[#allocation2 + $0x20] sm:$0xff]
          %v1443 = vld [vmem:[#allocation2 + $0x28] sm:$0xff]
          %v1444 = vld [vmem:[#allocation2 + $0x30] sm:$0xff]
          %v1445 = vld [vmem:[#allocation2 + $0x38] sm:$0xff]
          %v1446 = vld [vmem:[#allocation8] sm:$0x3]
          %v1448 = vperm.slane %v1446, 0
          %v1449 = vperm.slane %v1446, 1
          %v1452 = vadd.f32 %v1438, %v1448
          %v1453 = vadd.f32 %v1439, %v1449
          %v1454 = vadd.f32 %v1440, %v1448
          %v1455 = vadd.f32 %v1441, %v1449
          %v1456 = vadd.f32 %v1442, %v1448
          %v1457 = vadd.f32 %v1443, %v1449
          %v1458 = vadd.f32 %v1444, %v1448
          %v1459 = vadd.f32 %v1445, %v1449
          %v1460 = vmax.f32 %v1452, 0.0
          %v1461 = vmax.f32 %v1453, 0.0
          %v1462 = vmax.f32 %v1454, 0.0
          %v1463 = vmax.f32 %v1455, 0.0
          %v1464 = vmax.f32 %v1456, 0.0
          %v1465 = vmax.f32 %v1457, 0.0
          %v1466 = vmax.f32 %v1458, 0.0
          %v1467 = vmax.f32 %v1459, 0.0
          %1468 = vst [vmem:[%s267] sm:$0xff] %v1460
          %1469 = vst [vmem:[%s267 + $0x8] sm:$0xff] %v1461
          %1470 = vst [vmem:[%s267 + $0x10] sm:$0xff] %v1462
          %1471 = vst [vmem:[%s267 + $0x18] sm:$0xff] %v1463
          %1472 = vst [vmem:[%s267 + $0x20] sm:$0xff] %v1464
          %1473 = vst [vmem:[%s267 + $0x28] sm:$0xff] %v1465
          %1474 = vst [vmem:[%s267 + $0x30] sm:$0xff] %v1466
          %1475 = vst [vmem:[%s267 + $0x38] sm:$0xff] %v1467
        $region56: #{_forward.1} parent=31 // pred_fallthru
          _
        %s1476 = sand.u32 %s132, 1
        %s1477 = scalar_lea.sflag [#allocation5], %s1476
        %s1478 = sand.u32 %s132, 1
        %s1479 = smul.addr %s1478, 64
        %s1480 = scalar_lea.vmem [#allocation9], %s1479
        // Predicated region
        $region57: #{_forward.1} parent=31 // pred_check
          %p1481 = pneg %p142
        $region58: #{_forward.1} parent=31 // pred_check_branch
          %1483 = sbr.rel (%p1481) target = $region60
        $region59: #{_forward.1} parent=31 // pred_region
          %s1484 = smul.u32 4, %s26
          %s1485 = smul.u32 2, %s27
          %1487 = vsyncadd %s1477, 0
          %s1488 = smul.addr %s1484, 2
          %s1489 = sadd.s32 %s1485, %s1488
          %s1490 = smul.addr %s1489, 8
          %s1491 = scalar_lea.hbm %s3, %s1490
          %s1492 = sshll.u32 %s1480, 4
          %s1493 = int_to_ptr.vmem [resolvable:$true] %s1492
          %s1494 = sshll.u32 %s1491, 4
          %s1495 = int_to_ptr.hbm [resolvable:$true] %s1494
          %1500 = dma.vmem_to_hbm [thread:$0]  %s1493, 1024, %s1495, %s1477, 256, 256, 16
        $region60: #{_forward.1} parent=31 // pred_fallthru
          _
      $region32: #{_forward.1} parent=5 // pred_fallthru
        _
      %p1501 = scmp.le.s32.totalorder 2, %s16
      // Predicated region
      $region61: #{_forward.1} parent=5 // pred_check
        %p1502 = pneg %p1501
      $region62: #{_forward.1} parent=5 // pred_check_branch
        %1504 = sbr.rel (%p1502) target = $region64
      $region63: #{_forward.1} parent=5 // pred_region
        %s1505 = ssub.s32 %s16, 2
        // Predicated region
        $region65: #{_forward.1} parent=63 // pred_check
          %p1506 = pneg %p148
        $region66: #{_forward.1} parent=63 // pred_check_branch
          %1508 = sbr.rel (%p1506) target = $region68
        $region67: #{_forward.1} parent=63 // pred_region
          %s1509 = sand.u32 %s133, 1
          %s1510 = scalar_lea.sflag [#allocation5], %s1509
          %s1511 = sand.u32 %s133, 1
          %s1512 = smul.addr %s1511, 64
          %s1513 = scalar_lea.vmem [#allocation9], %s1512
          %1515 = dma.done %s1510, 1024
        $region68: #{_forward.1} parent=63 // pred_fallthru
          _
      $region64: #{_forward.1} parent=5 // pred_fallthru
        _
    $region6: #{_forward.1} parent=1 // loop_footer
      %s20 = sadd.s32 1, %s16
    $region7: #{_forward.1} parent=1 // loop_footer_branch
      %15 = sbr.rel target = $region3
    $region8: #{_forward.1} parent=1 // loop_exit
      _
    %1516 = vsyncpa [#allocation4], 1
    %s1517 = scalar_lea.sflag [#allocation4], 1
    %1518 = vsyncpa %s1517, 1
    %1519 = vsyncpa [#allocation7], 1
    %1520 = vsyncpa [#allocation5], 1
    %s1521 = scalar_lea.sflag [#allocation5], 1
    %1522 = vsyncpa %s1521, 1

</llo_original>
